<compile_context>
chip_gen: v5e
topology: v5e:2x2
jax: 0.10.0
libtpu: 0.0.40
codegen_flags: <defaults>
</compile_context>

<pallas_src>
import jax
import jax.numpy as jnp
from jax.experimental import pallas as pl
from jax.experimental.pallas import tpu as pltpu


def _round_up(x, m):
    return (x + m - 1) // m * m


def _choose_tb(batch):
    # 8-image tiles amortize the ~0.35us/grid-step overhead and make the output
    # store (8,128)-dense, while keeping >=2 grid steps at large B so the
    # "parallel" batch axis can feed both v7x TensorCores.  Small batches run
    # as a single full tile (block == full array, so no (8,128) constraint).
    return 8 if batch >= 16 else batch


# ----------------------------- Pallas kernel --------------------------------
def sat_forward_kernel(patches_ref, wtap_ref, bconv_ref, wlin_ref, blin_ref,
                       out_ref):
    # patches: (TB*H*W, Kp)  bf16  lane-dense im2col rows for this batch tile
    # wtap:    (Kp, Fp)      bf16  conv weight, row = kh*3C + kw*C + c (0-padded)
    # bconv:   (1, Fp)       f32
    # wlin:    (Fp, NCp)     f32
    # blin:    (1, NCp)      f32
    # out:     (TB, NCp)     f32
    TB, NCp = out_ref.shape
    M, _ = patches_ref.shape
    Fp = wtap_ref.shape[1]
    HW = M // TB

    # Conv2d as one large-M MXU matmul (bf16 operands, f32 accumulation).
    conv = jnp.dot(patches_ref[...], wtap_ref[...],
                   preferred_element_type=jnp.float32)          # (TB*HW, Fp)
    conv = jnp.maximum(conv + bconv_ref[...], 0.0)              # bias + ReLU

    # Global average pool: sum over spatial positions, constant 1/(H*W) scale.
    feats = conv.reshape(TB, HW, Fp).sum(axis=1) * (1.0 / HW)   # (TB, Fp) f32

    # Linear head in f32 (tiny matmul; keeps the pooled features exact).
    out_ref[...] = jnp.dot(feats, wlin_ref[...],
                           preferred_element_type=jnp.float32) + blin_ref[...]


# ------------------------------ JAX wrapper ----------------------------------
def self_adaptive_training_forward(x_nchw, params):
    """x_nchw: (B, C, H, W) float32. Returns logits (B, n_classes + 1)."""
    B, C, H, W = x_nchw.shape
    F = params["conv_w"].shape[0]
    NC1 = params["lin_w"].shape[0]
    Fp = _round_up(F, 128)          # lane-dense feature dim (use 256 on v6e/v7x if F > 128)
    NCp = _round_up(NC1, 128)       # lane-dense head dim
    Kp = _round_up(9 * C, 128)      # lane-dense im2col K

    TB = _choose_tb(B)
    Bp = _round_up(B, TB)           # remainder handling: zero-pad batch
    grid = (Bp // TB,)
    M_tile = TB * H * W

    # --- lane-dense im2col patches in HBM (one-time wrapper-side layout prep) ---
    x_nhwc = jnp.transpose(x_nchw, (0, 2, 3, 1))
    xp = jnp.pad(x_nhwc, ((0, Bp - B), (1, 1), (1, 1), (0, 0)))     # (Bp,H+2,W+2,C)
    slabs = [xp[:, kh:kh + H, kw:kw + W, :]
             for kh in range(3) for kw in range(3)]
    patches = jnp.concatenate(slabs, axis=-1).reshape(Bp * H * W, 9 * C)
    patches = jnp.pad(patches, ((0, 0), (0, Kp - 9 * C))).astype(jnp.bfloat16)

    # Conv weight (F, C, 3, 3) -> (9C, F), row = kh*3C + kw*C + c; pad to (Kp, Fp).
    wtap = params["conv_w"].transpose(2, 3, 1, 0).reshape(9 * C, F)
    wtap = jnp.pad(wtap, ((0, Kp - 9 * C), (0, Fp - F))).astype(jnp.bfloat16)
    bconv = jnp.pad(params["conv_b"], (0, Fp - F))[None, :]          # (1, Fp) f32
    wlin = jnp.pad(params["lin_w"].T, ((0, Fp - F), (0, NCp - NC1))) # (Fp, NCp) f32
    blin = jnp.pad(params["lin_b"], (0, NCp - NC1))[None, :]         # (1, NCp) f32

    flops = 2 * Bp * H * W * Kp * Fp + 2 * Bp * Fp * NCp
    bytes_accessed = int(patches.size * 2 + wtap.size * 2 + bconv.size * 4
                         + wlin.size * 4 + blin.size * 4 + Bp * NCp * 4)

    out = pl.pallas_call(
        sat_forward_kernel,
        out_shape=jax.ShapeDtypeStruct((Bp, NCp), jnp.float32),
        grid=grid,
        in_specs=[
            pl.BlockSpec((M_tile, Kp), lambda b: (b, 0)),   # patches (batch-tiled)
            pl.BlockSpec((Kp, Fp), lambda b: (0, 0)),       # resident conv weight
            pl.BlockSpec((1, Fp), lambda b: (0, 0)),        # resident conv bias
            pl.BlockSpec((Fp, NCp), lambda b: (0, 0)),      # resident head weight
            pl.BlockSpec((1, NCp), lambda b: (0, 0)),       # resident head bias
        ],
        out_specs=pl.BlockSpec((TB, NCp), lambda b: (b, 0)),
        compiler_params=pltpu.CompilerParams(
            dimension_semantics=("parallel",),
            vmem_limit_bytes=32 * 1024 * 1024,   # ample for these tiles; fits v7x's 64 MiB
        ),
        cost_estimate=pl.CostEstimate(
            flops=int(flops), transcendentals=0, bytes_accessed=bytes_accessed),
    )(patches, wtap, bconv, wlin, blin)

    return out[:B, :NC1]


# --------------------------- Deterministic params ----------------------------
def init_params(key, in_channels, features_dim, n_classes):
    k1, k2, k3, k4 = jax.random.split(key, 4)
    fan_conv = in_channels * 9
    fan_lin = features_dim
    return {
        "conv_w": jax.random.normal(k1, (features_dim, in_channels, 3, 3),
                                    jnp.float32) / jnp.sqrt(fan_conv),
        "conv_b": jax.random.normal(k2, (features_dim,), jnp.float32) * 0.01,
        "lin_w": jax.random.normal(k3, (n_classes + 1, features_dim),
                                   jnp.float32) / jnp.sqrt(fan_lin),
        "lin_b": jax.random.normal(k4, (n_classes + 1,), jnp.float32) * 0.01,
    }


if __name__ == "__main__":
    B, C, H, W = 2, 4, 16, 16
    FEATURES_DIM = 32
    N_CLASSES = 10                                    # head outputs n_classes + 1 = 11

    key = jax.random.PRNGKey(0)
    kx, kp = jax.random.split(key)
    x = jax.random.normal(kx, (B, C, H, W), jnp.float32)
    params = init_params(kp, C, FEATURES_DIM, N_CLASSES)

    logits = self_adaptive_training_forward(x, params)
    jax.block_until_ready(logits)
    assert logits.shape == (B, N_CLASSES + 1), logits.shape

    # Pure-JAX f32 reference of the fused forward (bf16 conv operands in the
    # kernel -> modest tolerance; head matmul is f32 in both).
    x_nhwc = jnp.transpose(x, (0, 2, 3, 1))
    conv_ref = jax.lax.conv_general_dilated(
        x_nhwc, jnp.transpose(params["conv_w"], (2, 3, 1, 0)),
        window_strides=(1, 1), padding="SAME",
        dimension_numbers=("NHWC", "HWIO", "NHWC"))
    conv_ref = jax.nn.relu(conv_ref + params["conv_b"])
    feats_ref = jnp.mean(conv_ref, axis=(1, 2))
    ref = feats_ref @ params["lin_w"].T + params["lin_b"]
    assert jnp.allclose(logits, ref, atol=1e-2, rtol=1e-2), \
        float(jnp.max(jnp.abs(logits - ref)))

    print("KERNEL_OK")
</pallas_src>

<mosaic_0001>
module attributes {stable_mosaic.version = 11 : i64} {
  func.func @sat_forward_kernel(%arg0: i32, %arg1: memref<512x128xbf16, #tpu.memory_space<vmem>>, %arg2: memref<128x128xbf16, #tpu.memory_space<vmem>>, %arg3: memref<1x128xf32, #tpu.memory_space<vmem>>, %arg4: memref<128x128xf32, #tpu.memory_space<vmem>>, %arg5: memref<1x128xf32, #tpu.memory_space<vmem>>, %arg6: memref<2x128xf32, #tpu.memory_space<vmem>>) attributes {dimension_semantics = [#tpu.dimension_semantics<parallel>], iteration_bounds = array<i64: 1>, scalar_prefetch = 0 : i64, scratch_operands = 0 : i64, tpu.core_type = #tpu.core_type<tc>, window_params = [{transform_indices = @transform_0, window_bounds = array<i64: 512, 128>}, {pipeline_mode = #tpu.pipeline_mode<synchronous>, transform_indices = @transform_1, window_bounds = array<i64: 128, 128>}, {pipeline_mode = #tpu.pipeline_mode<synchronous>, transform_indices = @transform_2, window_bounds = array<i64: 1, 128>}, {pipeline_mode = #tpu.pipeline_mode<synchronous>, transform_indices = @transform_3, window_bounds = array<i64: 128, 128>}, {pipeline_mode = #tpu.pipeline_mode<synchronous>, transform_indices = @transform_4, window_bounds = array<i64: 1, 128>}, {transform_indices = @transform_5, window_bounds = array<i64: 2, 128>}]} {
    %c0 = arith.constant 0 : index
    %c0_0 = arith.constant 0 : index
    %0 = vector.load %arg1[%c0, %c0_0] : memref<512x128xbf16, #tpu.memory_space<vmem>>, vector<512x128xbf16>
    %c0_1 = arith.constant 0 : index
    %c0_2 = arith.constant 0 : index
    %1 = vector.load %arg2[%c0_1, %c0_2] : memref<128x128xbf16, #tpu.memory_space<vmem>>, vector<128x128xbf16>
    %cst = arith.constant dense<0.000000e+00> : vector<512x128xf32>
    %2 = tpu.matmul %0, %1, %cst {dimension_numbers = #tpu.dot_dimension_numbers<[1], [0], [0], [1], [0, 0, 1, 1], [], []>} : vector<512x128xbf16>, vector<128x128xbf16>, vector<512x128xf32> -> vector<512x128xf32>
    %c0_3 = arith.constant 0 : index
    %c0_4 = arith.constant 0 : index
    %3 = vector.load %arg3[%c0_3, %c0_4] : memref<1x128xf32, #tpu.memory_space<vmem>>, vector<1x128xf32>
    %4 = vector.broadcast %3 : vector<1x128xf32> to vector<512x128xf32>
    %5 = arith.addf %2, %4 : vector<512x128xf32>
    %cst_5 = arith.constant 0.000000e+00 : f32
    %6 = vector.broadcast %cst_5 : f32 to vector<512x128xf32>
    %7 = arith.maximumf %5, %6 : vector<512x128xf32>
    %8 = vector.shape_cast %7 : vector<512x128xf32> to vector<2x256x128xf32>
    %cst_6 = arith.constant dense<0.000000e+00> : vector<2x128xf32>
    %9 = vector.multi_reduction <add>, %8, %cst_6 [1] : vector<2x256x128xf32> to vector<2x128xf32>
    %cst_7 = arith.constant 3.906250e-03 : f32
    %10 = vector.broadcast %cst_7 : f32 to vector<2x128xf32>
    %11 = arith.mulf %9, %10 : vector<2x128xf32>
    %c0_8 = arith.constant 0 : index
    %c0_9 = arith.constant 0 : index
    %12 = vector.load %arg4[%c0_8, %c0_9] : memref<128x128xf32, #tpu.memory_space<vmem>>, vector<128x128xf32>
    %cst_10 = arith.constant dense<0.000000e+00> : vector<2x128xf32>
    %13 = tpu.matmul %11, %12, %cst_10 {dimension_numbers = #tpu.dot_dimension_numbers<[1], [0], [0], [1], [0, 0, 1, 1], [], []>} : vector<2x128xf32>, vector<128x128xf32>, vector<2x128xf32> -> vector<2x128xf32>
    %c0_11 = arith.constant 0 : index
    %c0_12 = arith.constant 0 : index
    %14 = vector.load %arg5[%c0_11, %c0_12] : memref<1x128xf32, #tpu.memory_space<vmem>>, vector<1x128xf32>
    %15 = vector.broadcast %14 : vector<1x128xf32> to vector<2x128xf32>
    %16 = arith.addf %13, %15 : vector<2x128xf32>
    %c0_13 = arith.constant 0 : index
    %c0_14 = arith.constant 0 : index
    %17 = vector.load %arg6[%c0_13, %c0_14] : memref<2x128xf32, #tpu.memory_space<vmem>>, vector<2x128xf32>
    tpu.vector_store %arg6[%c0_13, %c0_14], %16 {strides = array<i32>} : memref<2x128xf32, #tpu.memory_space<vmem>>, vector<2x128xf32>,
    return
  }
  func.func @transform_0(%arg0: i32) -> (i32, i32) {
    %c0_i32 = arith.constant 0 : i32
    %c0_i32_0 = arith.constant 0 : i32
    return %arg0, %c0_i32 : i32, i32
  }
  func.func @transform_1(%arg0: i32) -> (i32, i32) {
    %c0_i32 = arith.constant 0 : i32
    %c0_i32_0 = arith.constant 0 : i32
    %c0_i32_1 = arith.constant 0 : i32
    return %c0_i32, %c0_i32_0 : i32, i32
  }
  func.func @transform_2(%arg0: i32) -> (i32, i32) {
    %c0_i32 = arith.constant 0 : i32
    %c0_i32_0 = arith.constant 0 : i32
    %c0_i32_1 = arith.constant 0 : i32
    return %c0_i32, %c0_i32_0 : i32, i32
  }
  func.func @transform_3(%arg0: i32) -> (i32, i32) {
    %c0_i32 = arith.constant 0 : i32
    %c0_i32_0 = arith.constant 0 : i32
    %c0_i32_1 = arith.constant 0 : i32
    return %c0_i32, %c0_i32_0 : i32, i32
  }
  func.func @transform_4(%arg0: i32) -> (i32, i32) {
    %c0_i32 = arith.constant 0 : i32
    %c0_i32_0 = arith.constant 0 : i32
    %c0_i32_1 = arith.constant 0 : i32
    return %c0_i32, %c0_i32_0 : i32, i32
  }
  func.func @transform_5(%arg0: i32) -> (i32, i32) {
    %c0_i32 = arith.constant 0 : i32
    %c0_i32_0 = arith.constant 0 : i32
    return %arg0, %c0_i32 : i32, i32
  }
}

</mosaic_0001>

<llo_original>
// kernel: tpu_custom_call.1
$region0: #{tpu_custom_call.1}
  #allocation0 [shape = 'u32[]', space=smem, size = 0x4, offset = 0x4, fixed_abs, tag = 'smem constant byte address 0x4 - core index']
  #allocation1 [shape = 'u32[72,128]{1,0:T(1,128)}', space=vmem, size = 0x9000, scoped, tag = 'internal scratch']
  %s0 = inlined_call_operand.hbm [shape: bf16[512,128], index: 0, kind: input, shape index: {}]
  %s1 = inlined_call_operand.hbm [shape: bf16[128,128], index: 1, kind: input, shape index: {}]
  %s2 = inlined_call_operand.vmem [shape: f32[1,128], index: 2, kind: input, shape index: {}]
  %s3 = inlined_call_operand.hbm [shape: f32[128,128], index: 3, kind: input, shape index: {}]
  %s4 = inlined_call_operand.vmem [shape: f32[1,128], index: 4, kind: input, shape index: {}]
  %s5 = inlined_call_operand.hbm [shape: f32[2,128], index: 5, kind: output, shape index: {}]
  %s6 = sld [smem:[#allocation0]]
  $region42: #{tpu_custom_call.1} parent=0
    _
  %s8 = ssub.s32 1, %s6
  %s9 = scalar_select 0, %s8, %s6
  $region1: #{tpu_custom_call.1} parent=0
    #allocation2 [shape = 'u8[131072]{0}', space=vmem, size = 0x20000, scoped, tag = 'input window, operand 0, single buffered']
    #allocation3 [shape = 's32[1]{0}', space=sflag, size = 0x4, scoped, tag = 'scoped memory for tpu_custom_call.1']
    #allocation4 [shape = 's32[1]{0}', space=sflag, size = 0x4, scoped, tag = 'scoped memory for tpu_custom_call.1']
    #allocation5 [shape = 'u8[32768]{0}', space=vmem, size = 0x8000, scoped, tag = 'input window, operand 1, single buffered']
    #allocation6 [shape = 's32[1]{0}', space=sflag, size = 0x4, scoped, tag = 'scoped memory for tpu_custom_call.1']
    #allocation7 [shape = 'u8[65536]{0}', space=vmem, size = 0x10000, scoped, tag = 'input window, operand 3, single buffered']
    #allocation8 [shape = 'u8[1024]{0}', space=vmem, size = 0x400, scoped, tag = 'output window, operand 0, single buffered']
    %10 = vsyncpa [#allocation3], 0
    %11 = vsyncpa [#allocation6], 0
    %12 = vsyncpa [#allocation4], 0
    // Predicated region
    $region2: #{tpu_custom_call.1} parent=1 // pred_check
      _
    $region3: #{tpu_custom_call.1} parent=1 // pred_check_branch
      %14 = sbr.rel (0) target = $region5
    $region4: #{tpu_custom_call.1} parent=1 // pred_region
      %16 = vsyncadd [#allocation3], 0
      %s17 = sshll.u32 %s0, 4
      %s18 = int_to_ptr.hbm [resolvable:$true] %s17
      %s19 = sshll.u32 [#allocation2], 4
      %s20 = int_to_ptr.vmem [resolvable:$true] %s19
      %25 = dma.hbm_to_vmem [thread:$0]  %s18, 4096, %s20, [#allocation3], 64, 64, 4
    $region5: #{tpu_custom_call.1} parent=1 // pred_fallthru
      _
    // Predicated region
    $region6: #{tpu_custom_call.1} parent=1 // pred_check
      _
    $region7: #{tpu_custom_call.1} parent=1 // pred_check_branch
      %27 = sbr.rel (0) target = $region9
    $region8: #{tpu_custom_call.1} parent=1 // pred_region
      %29 = vsyncadd [#allocation6], 0
      %s30 = sshll.u32 %s1, 4
      %s31 = int_to_ptr.hbm [resolvable:$true] %s30
      %s32 = sshll.u32 [#allocation5], 4
      %s33 = int_to_ptr.vmem [resolvable:$true] %s32
      %38 = dma.hbm_to_vmem [thread:$0]  %s31, 1024, %s33, [#allocation6], 64, 64, 4
    $region9: #{tpu_custom_call.1} parent=1 // pred_fallthru
      _
    // Predicated region
    $region10: #{tpu_custom_call.1} parent=1 // pred_check
      _
    $region11: #{tpu_custom_call.1} parent=1 // pred_check_branch
      %40 = sbr.rel (0) target = $region13
    $region12: #{tpu_custom_call.1} parent=1 // pred_region
      _
    $region13: #{tpu_custom_call.1} parent=1 // pred_fallthru
      _
    // Predicated region
    $region14: #{tpu_custom_call.1} parent=1 // pred_check
      _
    $region15: #{tpu_custom_call.1} parent=1 // pred_check_branch
      %42 = sbr.rel (0) target = $region17
    $region16: #{tpu_custom_call.1} parent=1 // pred_region
      %44 = vsyncadd [#allocation6], 0
      %s45 = sshll.u32 %s3, 4
      %s46 = int_to_ptr.hbm [resolvable:$true] %s45
      %s47 = sshll.u32 [#allocation7], 4
      %s48 = int_to_ptr.vmem [resolvable:$true] %s47
      %53 = dma.hbm_to_vmem [thread:$0]  %s46, 2048, %s48, [#allocation6], 128, 128, 8
    $region17: #{tpu_custom_call.1} parent=1 // pred_fallthru
      _
    // Predicated region
    $region18: #{tpu_custom_call.1} parent=1 // pred_check
      _
    $region19: #{tpu_custom_call.1} parent=1 // pred_check_branch
      %55 = sbr.rel (0) target = $region21
    $region20: #{tpu_custom_call.1} parent=1 // pred_region
      _
    $region21: #{tpu_custom_call.1} parent=1 // pred_fallthru
      _
    // Predicated region
    $region22: #{tpu_custom_call.1} parent=1 // pred_check
      _
    $region23: #{tpu_custom_call.1} parent=1 // pred_check_branch
      %57 = sbr.rel (0) target = $region25
    $region24: #{tpu_custom_call.1} parent=1 // pred_region
      %59 = dma.done [#allocation3], 4096
    $region25: #{tpu_custom_call.1} parent=1 // pred_fallthru
      _
    // Predicated region
    $region26: #{tpu_custom_call.1} parent=1 // pred_check
      _
    $region27: #{tpu_custom_call.1} parent=1 // pred_check_branch
      %61 = sbr.rel (0) target = $region29
    $region28: #{tpu_custom_call.1} parent=1 // pred_region
      %63 = dma.done [#allocation6], 1024
    $region29: #{tpu_custom_call.1} parent=1 // pred_fallthru
      _
    // Predicated region
    $region30: #{tpu_custom_call.1} parent=1 // pred_check
      _
    $region31: #{tpu_custom_call.1} parent=1 // pred_check_branch
      %65 = sbr.rel (0) target = $region33
    $region32: #{tpu_custom_call.1} parent=1 // pred_region
      %67 = dma.done [#allocation6], 2048
    $region33: #{tpu_custom_call.1} parent=1 // pred_fallthru
      _
    %v68 = vld [vmem:[#allocation2] sm:$0xf]
    %v69 = vld [vmem:[#allocation2 + $0x4] sm:$0xf]
    %v70 = vld [vmem:[#allocation2 + $0x8] sm:$0xf]
    %v71 = vld [vmem:[#allocation2 + $0xc] sm:$0xf]
    %v72 = vld [vmem:[#allocation2 + $0x10] sm:$0xf]
    %v73 = vld [vmem:[#allocation2 + $0x14] sm:$0xf]
    %v74 = vld [vmem:[#allocation2 + $0x18] sm:$0xf]
    %v75 = vld [vmem:[#allocation2 + $0x1c] sm:$0xf]
    %v76 = vld [vmem:[#allocation2 + $0x20] sm:$0xf]
    %v77 = vld [vmem:[#allocation2 + $0x24] sm:$0xf]
    %v78 = vld [vmem:[#allocation2 + $0x28] sm:$0xf]
    %v79 = vld [vmem:[#allocation2 + $0x2c] sm:$0xf]
    %v80 = vld [vmem:[#allocation2 + $0x30] sm:$0xf]
    %v81 = vld [vmem:[#allocation2 + $0x34] sm:$0xf]
    %v82 = vld [vmem:[#allocation2 + $0x38] sm:$0xf]
    %v83 = vld [vmem:[#allocation2 + $0x3c] sm:$0xf]
    %v84 = vld [vmem:[#allocation2 + $0x40] sm:$0xf]
    %v85 = vld [vmem:[#allocation2 + $0x44] sm:$0xf]
    %v86 = vld [vmem:[#allocation2 + $0x48] sm:$0xf]
    %v87 = vld [vmem:[#allocation2 + $0x4c] sm:$0xf]
    %v88 = vld [vmem:[#allocation2 + $0x50] sm:$0xf]
    %v89 = vld [vmem:[#allocation2 + $0x54] sm:$0xf]
    %v90 = vld [vmem:[#allocation2 + $0x58] sm:$0xf]
    %v91 = vld [vmem:[#allocation2 + $0x5c] sm:$0xf]
    %v92 = vld [vmem:[#allocation2 + $0x60] sm:$0xf]
    %v93 = vld [vmem:[#allocation2 + $0x64] sm:$0xf]
    %v94 = vld [vmem:[#allocation2 + $0x68] sm:$0xf]
    %v95 = vld [vmem:[#allocation2 + $0x6c] sm:$0xf]
    %v96 = vld [vmem:[#allocation2 + $0x70] sm:$0xf]
    %v97 = vld [vmem:[#allocation2 + $0x74] sm:$0xf]
    %v98 = vld [vmem:[#allocation2 + $0x78] sm:$0xf]
    %v99 = vld [vmem:[#allocation2 + $0x7c] sm:$0xf]
    %v100 = vld [vmem:[#allocation2 + $0x80] sm:$0xf]
    %v101 = vld [vmem:[#allocation2 + $0x84] sm:$0xf]
    %v102 = vld [vmem:[#allocation2 + $0x88] sm:$0xf]
    %v103 = vld [vmem:[#allocation2 + $0x8c] sm:$0xf]
    %v104 = vld [vmem:[#allocation2 + $0x90] sm:$0xf]
    %v105 = vld [vmem:[#allocation2 + $0x94] sm:$0xf]
    %v106 = vld [vmem:[#allocation2 + $0x98] sm:$0xf]
    %v107 = vld [vmem:[#allocation2 + $0x9c] sm:$0xf]
    %v108 = vld [vmem:[#allocation2 + $0xa0] sm:$0xf]
    %v109 = vld [vmem:[#allocation2 + $0xa4] sm:$0xf]
    %v110 = vld [vmem:[#allocation2 + $0xa8] sm:$0xf]
    %v111 = vld [vmem:[#allocation2 + $0xac] sm:$0xf]
    %v112 = vld [vmem:[#allocation2 + $0xb0] sm:$0xf]
    %v113 = vld [vmem:[#allocation2 + $0xb4] sm:$0xf]
    %v114 = vld [vmem:[#allocation2 + $0xb8] sm:$0xf]
    %v115 = vld [vmem:[#allocation2 + $0xbc] sm:$0xf]
    %v116 = vld [vmem:[#allocation2 + $0xc0] sm:$0xf]
    %v117 = vld [vmem:[#allocation2 + $0xc4] sm:$0xf]
    %v118 = vld [vmem:[#allocation2 + $0xc8] sm:$0xf]
    %v119 = vld [vmem:[#allocation2 + $0xcc] sm:$0xf]
    %v120 = vld [vmem:[#allocation2 + $0xd0] sm:$0xf]
    %v121 = vld [vmem:[#allocation2 + $0xd4] sm:$0xf]
    %v122 = vld [vmem:[#allocation2 + $0xd8] sm:$0xf]
    %v123 = vld [vmem:[#allocation2 + $0xdc] sm:$0xf]
    %v124 = vld [vmem:[#allocation2 + $0xe0] sm:$0xf]
    %v125 = vld [vmem:[#allocation2 + $0xe4] sm:$0xf]
    %v126 = vld [vmem:[#allocation2 + $0xe8] sm:$0xf]
    %v127 = vld [vmem:[#allocation2 + $0xec] sm:$0xf]
    %v128 = vld [vmem:[#allocation2 + $0xf0] sm:$0xf]
    %v129 = vld [vmem:[#allocation2 + $0xf4] sm:$0xf]
    %v130 = vld [vmem:[#allocation2 + $0xf8] sm:$0xf]
    %v131 = vld [vmem:[#allocation2 + $0xfc] sm:$0xf]
    %v132 = vld [vmem:[#allocation5] sm:$0xf]
    %v133 = vld [vmem:[#allocation5 + $0x4] sm:$0xf]
    %v134 = vld [vmem:[#allocation5 + $0x8] sm:$0xf]
    %v135 = vld [vmem:[#allocation5 + $0xc] sm:$0xf]
    %v136 = vld [vmem:[#allocation5 + $0x10] sm:$0xf]
    %v137 = vld [vmem:[#allocation5 + $0x14] sm:$0xf]
    %v138 = vld [vmem:[#allocation5 + $0x18] sm:$0xf]
    %v139 = vld [vmem:[#allocation5 + $0x1c] sm:$0xf]
    %v140 = vld [vmem:[#allocation5 + $0x20] sm:$0xf]
    %v141 = vld [vmem:[#allocation5 + $0x24] sm:$0xf]
    %v142 = vld [vmem:[#allocation5 + $0x28] sm:$0xf]
    %v143 = vld [vmem:[#allocation5 + $0x2c] sm:$0xf]
    %v144 = vld [vmem:[#allocation5 + $0x30] sm:$0xf]
    %v145 = vld [vmem:[#allocation5 + $0x34] sm:$0xf]
    %v146 = vld [vmem:[#allocation5 + $0x38] sm:$0xf]
    %v147 = vld [vmem:[#allocation5 + $0x3c] sm:$0xf]
    %v148 = vld [vmem:[%s2] sm:$0x1]
    %v150 = vperm.slane %v148, 0
    %v216 = vunpack.c.l.b16 %v68
    %v217 = vunpack.c.l.b16 %v69
    %v218 = vunpack.c.l.b16 %v70
    %v219 = vunpack.c.l.b16 %v71
    %v220 = vunpack.c.l.b16 %v72
    %v221 = vunpack.c.l.b16 %v73
    %v222 = vunpack.c.l.b16 %v74
    %v223 = vunpack.c.l.b16 %v75
    %v224 = vunpack.c.l.b16 %v76
    %v225 = vunpack.c.l.b16 %v77
    %v226 = vunpack.c.l.b16 %v78
    %v227 = vunpack.c.l.b16 %v79
    %v228 = vunpack.c.l.b16 %v80
    %v229 = vunpack.c.l.b16 %v81
    %v230 = vunpack.c.l.b16 %v82
    %v231 = vunpack.c.l.b16 %v83
    %v232 = vunpack.c.l.b16 %v84
    %v233 = vunpack.c.l.b16 %v85
    %v234 = vunpack.c.l.b16 %v86
    %v235 = vunpack.c.l.b16 %v87
    %v236 = vunpack.c.l.b16 %v88
    %v237 = vunpack.c.l.b16 %v89
    %v238 = vunpack.c.l.b16 %v90
    %v239 = vunpack.c.l.b16 %v91
    %v240 = vunpack.c.l.b16 %v92
    %v241 = vunpack.c.l.b16 %v93
    %v242 = vunpack.c.l.b16 %v94
    %v243 = vunpack.c.l.b16 %v95
    %v244 = vunpack.c.l.b16 %v96
    %v245 = vunpack.c.l.b16 %v97
    %v246 = vunpack.c.l.b16 %v98
    %v247 = vunpack.c.l.b16 %v99
    %v248 = vunpack.c.l.b16 %v100
    %v249 = vunpack.c.l.b16 %v101
    %v250 = vunpack.c.l.b16 %v102
    %v251 = vunpack.c.l.b16 %v103
    %v252 = vunpack.c.l.b16 %v104
    %v253 = vunpack.c.l.b16 %v105
    %v254 = vunpack.c.l.b16 %v106
    %v255 = vunpack.c.l.b16 %v107
    %v256 = vunpack.c.l.b16 %v108
    %v257 = vunpack.c.l.b16 %v109
    %v258 = vunpack.c.l.b16 %v110
    %v259 = vunpack.c.l.b16 %v111
    %v260 = vunpack.c.l.b16 %v112
    %v261 = vunpack.c.l.b16 %v113
    %v262 = vunpack.c.l.b16 %v114
    %v263 = vunpack.c.l.b16 %v115
    %v264 = vunpack.c.l.b16 %v116
    %v265 = vunpack.c.l.b16 %v117
    %v266 = vunpack.c.l.b16 %v118
    %v267 = vunpack.c.l.b16 %v119
    %v268 = vunpack.c.l.b16 %v120
    %v269 = vunpack.c.l.b16 %v121
    %v270 = vunpack.c.l.b16 %v122
    %v271 = vunpack.c.l.b16 %v123
    %v272 = vunpack.c.l.b16 %v124
    %v273 = vunpack.c.l.b16 %v125
    %v274 = vunpack.c.l.b16 %v126
    %v275 = vunpack.c.l.b16 %v127
    %v276 = vunpack.c.l.b16 %v128
    %v277 = vunpack.c.l.b16 %v129
    %v278 = vunpack.c.l.b16 %v130
    %v279 = vunpack.c.l.b16 %v131
    %v280 = vpack.c.b16 %v217, %v216
    %v281 = vpack.c.b16 %v219, %v218
    %v282 = vpack.c.b16 %v221, %v220
    %v283 = vpack.c.b16 %v223, %v222
    %v284 = vpack.c.b16 %v225, %v224
    %v285 = vpack.c.b16 %v227, %v226
    %v286 = vpack.c.b16 %v229, %v228
    %v287 = vpack.c.b16 %v231, %v230
    %v288 = vpack.c.b16 %v233, %v232
    %v289 = vpack.c.b16 %v235, %v234
    %v290 = vpack.c.b16 %v237, %v236
    %v291 = vpack.c.b16 %v239, %v238
    %v292 = vpack.c.b16 %v241, %v240
    %v293 = vpack.c.b16 %v243, %v242
    %v294 = vpack.c.b16 %v245, %v244
    %v295 = vpack.c.b16 %v247, %v246
    %v296 = vpack.c.b16 %v249, %v248
    %v297 = vpack.c.b16 %v251, %v250
    %v298 = vpack.c.b16 %v253, %v252
    %v299 = vpack.c.b16 %v255, %v254
    %v300 = vpack.c.b16 %v257, %v256
    %v301 = vpack.c.b16 %v259, %v258
    %v302 = vpack.c.b16 %v261, %v260
    %v303 = vpack.c.b16 %v263, %v262
    %v304 = vpack.c.b16 %v265, %v264
    %v305 = vpack.c.b16 %v267, %v266
    %v306 = vpack.c.b16 %v269, %v268
    %v307 = vpack.c.b16 %v271, %v270
    %v308 = vpack.c.b16 %v273, %v272
    %v309 = vpack.c.b16 %v275, %v274
    %v310 = vpack.c.b16 %v277, %v276
    %v311 = vpack.c.b16 %v279, %v278
    %v360 = vunpack.c.l.b16 %v132
    %v361 = vunpack.c.l.b16 %v133
    %v362 = vunpack.c.l.b16 %v134
    %v363 = vunpack.c.l.b16 %v135
    %v364 = vunpack.c.l.b16 %v136
    %v365 = vunpack.c.l.b16 %v137
    %v366 = vunpack.c.l.b16 %v138
    %v367 = vunpack.c.l.b16 %v139
    %v368 = vunpack.c.l.b16 %v140
    %v369 = vunpack.c.l.b16 %v141
    %v370 = vunpack.c.l.b16 %v142
    %v371 = vunpack.c.l.b16 %v143
    %v372 = vunpack.c.l.b16 %v144
    %v373 = vunpack.c.l.b16 %v145
    %v374 = vunpack.c.l.b16 %v146
    %v375 = vunpack.c.l.b16 %v147
    %v376 = vpack.c.b16 %v361, %v360
    %v377 = vpack.c.b16 %v363, %v362
    %v378 = vpack.c.b16 %v365, %v364
    %v379 = vpack.c.b16 %v367, %v366
    %v380 = vpack.c.b16 %v369, %v368
    %v381 = vpack.c.b16 %v371, %v370
    %v382 = vpack.c.b16 %v373, %v372
    %v383 = vpack.c.b16 %v375, %v374
    %392 = vmatpush.bf16.msra.mxu0 %v383
    %393 = vmatpush.bf16.msra.mxu0 %v382
    %394 = vmatpush.bf16.msra.mxu0 %v381
    %395 = vmatpush.bf16.msra.mxu0 %v380
    %396 = vmatpush.bf16.msra.mxu0 %v379
    %397 = vmatpush.bf16.msra.mxu0 %v378
    %398 = vmatpush.bf16.msra.mxu0 %v377
    %399 = vmatpush.bf16.msra.mxu0 %v376
    %400 = vmatmul.bf16.gmra.mxu0 %v280
    %v401 = vpop.f32.mrf.mxu0
    %v402 = vadd.f32 %v150, %v401
    %v403 = vpop.f32.mrf.mxu0
    %v404 = vadd.f32 %v150, %v403
    %405 = vmatmul.bf16.gmra.mxu0 %v281
    %v406 = vpop.f32.mrf.mxu0
    %v407 = vadd.f32 %v150, %v406
    %v408 = vpop.f32.mrf.mxu0
    %v409 = vadd.f32 %v150, %v408
    %410 = vmatmul.bf16.gmra.mxu0 %v282
    %v411 = vpop.f32.mrf.mxu0
    %v412 = vadd.f32 %v150, %v411
    %v413 = vpop.f32.mrf.mxu0
    %v414 = vadd.f32 %v150, %v413
    %415 = vmatmul.bf16.gmra.mxu0 %v283
    %v416 = vpop.f32.mrf.mxu0
    %v417 = vadd.f32 %v150, %v416
    %v418 = vpop.f32.mrf.mxu0
    %v419 = vadd.f32 %v150, %v418
    %420 = vmatmul.bf16.gmra.mxu0 %v284
    %v421 = vpop.f32.mrf.mxu0
    %v422 = vadd.f32 %v150, %v421
    %v423 = vpop.f32.mrf.mxu0
    %v424 = vadd.f32 %v150, %v423
    %425 = vmatmul.bf16.gmra.mxu0 %v285
    %v426 = vpop.f32.mrf.mxu0
    %v427 = vadd.f32 %v150, %v426
    %v428 = vpop.f32.mrf.mxu0
    %v429 = vadd.f32 %v150, %v428
    %430 = vmatmul.bf16.gmra.mxu0 %v286
    %v431 = vpop.f32.mrf.mxu0
    %v432 = vadd.f32 %v150, %v431
    %v433 = vpop.f32.mrf.mxu0
    %v434 = vadd.f32 %v150, %v433
    %435 = vmatmul.bf16.gmra.mxu0 %v287
    %v436 = vpop.f32.mrf.mxu0
    %v437 = vadd.f32 %v150, %v436
    %v438 = vpop.f32.mrf.mxu0
    %v439 = vadd.f32 %v150, %v438
    %440 = vmatmul.bf16.gmra.mxu0 %v288
    %v441 = vpop.f32.mrf.mxu0
    %v442 = vadd.f32 %v150, %v441
    %v443 = vpop.f32.mrf.mxu0
    %v444 = vadd.f32 %v150, %v443
    %445 = vmatmul.bf16.gmra.mxu0 %v289
    %v446 = vpop.f32.mrf.mxu0
    %v447 = vadd.f32 %v150, %v446
    %v448 = vpop.f32.mrf.mxu0
    %v449 = vadd.f32 %v150, %v448
    %450 = vmatmul.bf16.gmra.mxu0 %v290
    %v451 = vpop.f32.mrf.mxu0
    %v452 = vadd.f32 %v150, %v451
    %v453 = vpop.f32.mrf.mxu0
    %v454 = vadd.f32 %v150, %v453
    %455 = vmatmul.bf16.gmra.mxu0 %v291
    %v456 = vpop.f32.mrf.mxu0
    %v457 = vadd.f32 %v150, %v456
    %v458 = vpop.f32.mrf.mxu0
    %v459 = vadd.f32 %v150, %v458
    %460 = vmatmul.bf16.gmra.mxu0 %v292
    %v461 = vpop.f32.mrf.mxu0
    %v462 = vadd.f32 %v150, %v461
    %v463 = vpop.f32.mrf.mxu0
    %v464 = vadd.f32 %v150, %v463
    %465 = vmatmul.bf16.gmra.mxu0 %v293
    %v466 = vpop.f32.mrf.mxu0
    %v467 = vadd.f32 %v150, %v466
    %v468 = vpop.f32.mrf.mxu0
    %v469 = vadd.f32 %v150, %v468
    %470 = vmatmul.bf16.gmra.mxu0 %v294
    %v471 = vpop.f32.mrf.mxu0
    %v472 = vadd.f32 %v150, %v471
    %v473 = vpop.f32.mrf.mxu0
    %v474 = vadd.f32 %v150, %v473
    %475 = vmatmul.bf16.gmra.mxu0 %v295
    %v476 = vpop.f32.mrf.mxu0
    %v477 = vadd.f32 %v150, %v476
    %v478 = vpop.f32.mrf.mxu0
    %v479 = vadd.f32 %v150, %v478
    %480 = vmatmul.bf16.gmra.mxu0 %v296
    %v481 = vpop.f32.mrf.mxu0
    %v482 = vadd.f32 %v150, %v481
    %v483 = vpop.f32.mrf.mxu0
    %v484 = vadd.f32 %v150, %v483
    %485 = vmatmul.bf16.gmra.mxu0 %v297
    %v486 = vpop.f32.mrf.mxu0
    %v487 = vadd.f32 %v150, %v486
    %v488 = vpop.f32.mrf.mxu0
    %v489 = vadd.f32 %v150, %v488
    %490 = vmatmul.bf16.gmra.mxu0 %v298
    %v491 = vpop.f32.mrf.mxu0
    %v492 = vadd.f32 %v150, %v491
    %v493 = vpop.f32.mrf.mxu0
    %v494 = vadd.f32 %v150, %v493
    %495 = vmatmul.bf16.gmra.mxu0 %v299
    %v496 = vpop.f32.mrf.mxu0
    %v497 = vadd.f32 %v150, %v496
    %v498 = vpop.f32.mrf.mxu0
    %v499 = vadd.f32 %v150, %v498
    %500 = vmatmul.bf16.gmra.mxu0 %v300
    %v501 = vpop.f32.mrf.mxu0
    %v502 = vadd.f32 %v150, %v501
    %v503 = vpop.f32.mrf.mxu0
    %v504 = vadd.f32 %v150, %v503
    %505 = vmatmul.bf16.gmra.mxu0 %v301
    %v506 = vpop.f32.mrf.mxu0
    %v507 = vadd.f32 %v150, %v506
    %v508 = vpop.f32.mrf.mxu0
    %v509 = vadd.f32 %v150, %v508
    %510 = vmatmul.bf16.gmra.mxu0 %v302
    %v511 = vpop.f32.mrf.mxu0
    %v512 = vadd.f32 %v150, %v511
    %v513 = vpop.f32.mrf.mxu0
    %v514 = vadd.f32 %v150, %v513
    %515 = vmatmul.bf16.gmra.mxu0 %v303
    %v516 = vpop.f32.mrf.mxu0
    %v517 = vadd.f32 %v150, %v516
    %v518 = vpop.f32.mrf.mxu0
    %v519 = vadd.f32 %v150, %v518
    %520 = vmatmul.bf16.gmra.mxu0 %v304
    %v521 = vpop.f32.mrf.mxu0
    %v522 = vadd.f32 %v150, %v521
    %v523 = vpop.f32.mrf.mxu0
    %v524 = vadd.f32 %v150, %v523
    %525 = vmatmul.bf16.gmra.mxu0 %v305
    %v526 = vpop.f32.mrf.mxu0
    %v527 = vadd.f32 %v150, %v526
    %v528 = vpop.f32.mrf.mxu0
    %v529 = vadd.f32 %v150, %v528
    %530 = vmatmul.bf16.gmra.mxu0 %v306
    %v531 = vpop.f32.mrf.mxu0
    %v532 = vadd.f32 %v150, %v531
    %v533 = vpop.f32.mrf.mxu0
    %v534 = vadd.f32 %v150, %v533
    %535 = vmatmul.bf16.gmra.mxu0 %v307
    %v536 = vpop.f32.mrf.mxu0
    %v537 = vadd.f32 %v150, %v536
    %v538 = vpop.f32.mrf.mxu0
    %v539 = vadd.f32 %v150, %v538
    %540 = vmatmul.bf16.gmra.mxu0 %v308
    %v541 = vpop.f32.mrf.mxu0
    %v542 = vadd.f32 %v150, %v541
    %v543 = vpop.f32.mrf.mxu0
    %v544 = vadd.f32 %v150, %v543
    %545 = vmatmul.bf16.gmra.mxu0 %v309
    %v546 = vpop.f32.mrf.mxu0
    %v547 = vadd.f32 %v150, %v546
    %v548 = vpop.f32.mrf.mxu0
    %v549 = vadd.f32 %v150, %v548
    %550 = vmatmul.bf16.gmra.mxu0 %v310
    %v551 = vpop.f32.mrf.mxu0
    %v552 = vadd.f32 %v150, %v551
    %v553 = vpop.f32.mrf.mxu0
    %v554 = vadd.f32 %v150, %v553
    %555 = vmatmul.bf16.gmra.mxu0 %v311
    %v556 = vpop.f32.mrf.mxu0
    %v557 = vadd.f32 %v150, %v556
    %v558 = vpop.f32.mrf.mxu0
    %v559 = vadd.f32 %v150, %v558
    %560 = vdwg.mxu0
    %v561 = vmax.f32 %v402, 0.0
    %v562 = vmax.f32 %v404, 0.0
    %v563 = vmax.f32 %v407, 0.0
    %v564 = vmax.f32 %v409, 0.0
    %v565 = vmax.f32 %v412, 0.0
    %v566 = vmax.f32 %v414, 0.0
    %v567 = vmax.f32 %v417, 0.0
    %v568 = vmax.f32 %v419, 0.0
    %v569 = vmax.f32 %v422, 0.0
    %v570 = vmax.f32 %v424, 0.0
    %v571 = vmax.f32 %v427, 0.0
    %v572 = vmax.f32 %v429, 0.0
    %v573 = vmax.f32 %v432, 0.0
    %v574 = vmax.f32 %v434, 0.0
    %v575 = vmax.f32 %v437, 0.0
    %v576 = vmax.f32 %v439, 0.0
    %v577 = vmax.f32 %v442, 0.0
    %v578 = vmax.f32 %v444, 0.0
    %v579 = vmax.f32 %v447, 0.0
    %v580 = vmax.f32 %v449, 0.0
    %v581 = vmax.f32 %v452, 0.0
    %v582 = vmax.f32 %v454, 0.0
    %v583 = vmax.f32 %v457, 0.0
    %v584 = vmax.f32 %v459, 0.0
    %v585 = vmax.f32 %v462, 0.0
    %v586 = vmax.f32 %v464, 0.0
    %v587 = vmax.f32 %v467, 0.0
    %v588 = vmax.f32 %v469, 0.0
    %v589 = vmax.f32 %v472, 0.0
    %v590 = vmax.f32 %v474, 0.0
    %v591 = vmax.f32 %v477, 0.0
    %v592 = vmax.f32 %v479, 0.0
    %v593 = vmax.f32 %v482, 0.0
    %v594 = vmax.f32 %v484, 0.0
    %v595 = vmax.f32 %v487, 0.0
    %v596 = vmax.f32 %v489, 0.0
    %v597 = vmax.f32 %v492, 0.0
    %v598 = vmax.f32 %v494, 0.0
    %v599 = vmax.f32 %v497, 0.0
    %v600 = vmax.f32 %v499, 0.0
    %v601 = vmax.f32 %v502, 0.0
    %v602 = vmax.f32 %v504, 0.0
    %v603 = vmax.f32 %v507, 0.0
    %v604 = vmax.f32 %v509, 0.0
    %v605 = vmax.f32 %v512, 0.0
    %v606 = vmax.f32 %v514, 0.0
    %v607 = vmax.f32 %v517, 0.0
    %v608 = vmax.f32 %v519, 0.0
    %v609 = vmax.f32 %v522, 0.0
    %v610 = vmax.f32 %v524, 0.0
    %v611 = vmax.f32 %v527, 0.0
    %v612 = vmax.f32 %v529, 0.0
    %v613 = vmax.f32 %v532, 0.0
    %v614 = vmax.f32 %v534, 0.0
    %v615 = vmax.f32 %v537, 0.0
    %v616 = vmax.f32 %v539, 0.0
    %v617 = vmax.f32 %v542, 0.0
    %v618 = vmax.f32 %v544, 0.0
    %v619 = vmax.f32 %v547, 0.0
    %v620 = vmax.f32 %v549, 0.0
    %v621 = vmax.f32 %v552, 0.0
    %v622 = vmax.f32 %v554, 0.0
    %v623 = vmax.f32 %v557, 0.0
    %v624 = vmax.f32 %v559, 0.0
    %v625 = vadd.f32 %v561, %v562
    %v626 = vadd.f32 %v625, %v563
    %v627 = vadd.f32 %v626, %v564
    %v628 = vadd.f32 %v627, %v565
    %v629 = vadd.f32 %v628, %v566
    %v630 = vadd.f32 %v629, %v567
    %v631 = vadd.f32 %v630, %v568
    %v632 = vadd.f32 %v631, %v569
    %v633 = vadd.f32 %v632, %v570
    %v634 = vadd.f32 %v633, %v571
    %v635 = vadd.f32 %v634, %v572
    %v636 = vadd.f32 %v635, %v573
    %v637 = vadd.f32 %v636, %v574
    %v638 = vadd.f32 %v637, %v575
    %v639 = vadd.f32 %v638, %v576
    %v640 = vadd.f32 %v639, %v577
    %v641 = vadd.f32 %v640, %v578
    %v642 = vadd.f32 %v641, %v579
    %v643 = vadd.f32 %v642, %v580
    %v644 = vadd.f32 %v643, %v581
    %v645 = vadd.f32 %v644, %v582
    %v646 = vadd.f32 %v645, %v583
    %v647 = vadd.f32 %v646, %v584
    %v648 = vadd.f32 %v647, %v585
    %v649 = vadd.f32 %v648, %v586
    %v650 = vadd.f32 %v649, %v587
    %v651 = vadd.f32 %v650, %v588
    %v652 = vadd.f32 %v651, %v589
    %v653 = vadd.f32 %v652, %v590
    %v654 = vadd.f32 %v653, %v591
    %v655 = vadd.f32 %v654, %v592
    %v656 = vrot.slane %v655, 4
    %v657 = vadd.f32 %v655, %v656
    %v658 = vrot.slane %v657, 2
    %v659 = vadd.f32 %v657, %v658
    %v660 = vrot.slane %v659, 1
    %v661 = vadd.f32 %v659, %v660
    %v662 = vadd.f32 %v593, %v594
    %v663 = vadd.f32 %v662, %v595
    %v664 = vadd.f32 %v663, %v596
    %v665 = vadd.f32 %v664, %v597
    %v666 = vadd.f32 %v665, %v598
    %v667 = vadd.f32 %v666, %v599
    %v668 = vadd.f32 %v667, %v600
    %v669 = vadd.f32 %v668, %v601
    %v670 = vadd.f32 %v669, %v602
    %v671 = vadd.f32 %v670, %v603
    %v672 = vadd.f32 %v671, %v604
    %v673 = vadd.f32 %v672, %v605
    %v674 = vadd.f32 %v673, %v606
    %v675 = vadd.f32 %v674, %v607
    %v676 = vadd.f32 %v675, %v608
    %v677 = vadd.f32 %v676, %v609
    %v678 = vadd.f32 %v677, %v610
    %v679 = vadd.f32 %v678, %v611
    %v680 = vadd.f32 %v679, %v612
    %v681 = vadd.f32 %v680, %v613
    %v682 = vadd.f32 %v681, %v614
    %v683 = vadd.f32 %v682, %v615
    %v684 = vadd.f32 %v683, %v616
    %v685 = vadd.f32 %v684, %v617
    %v686 = vadd.f32 %v685, %v618
    %v687 = vadd.f32 %v686, %v619
    %v688 = vadd.f32 %v687, %v620
    %v689 = vadd.f32 %v688, %v621
    %v690 = vadd.f32 %v689, %v622
    %v691 = vadd.f32 %v690, %v623
    %v692 = vadd.f32 %v691, %v624
    %v693 = vrot.slane %v692, 4
    %v694 = vadd.f32 %v692, %v693
    %v695 = vrot.slane %v694, 2
    %v696 = vadd.f32 %v694, %v695
    %v697 = vrot.slane %v696, 1
    %v698 = vadd.f32 %v696, %v697
    %v699 = vmul.f32 %v661, 0.00390625
    %v700 = vmul.f32 %v698, 0.00390625
    %v701 = vld [vmem:[#allocation7] sm:$0xff]
    %v702 = vld [vmem:[#allocation7 + $0x8] sm:$0xff]
    %v703 = vld [vmem:[#allocation7 + $0x10] sm:$0xff]
    %v704 = vld [vmem:[#allocation7 + $0x18] sm:$0xff]
    %v705 = vld [vmem:[#allocation7 + $0x20] sm:$0xff]
    %v706 = vld [vmem:[#allocation7 + $0x28] sm:$0xff]
    %v707 = vld [vmem:[#allocation7 + $0x30] sm:$0xff]
    %v708 = vld [vmem:[#allocation7 + $0x38] sm:$0xff]
    %v709 = vld [vmem:[#allocation7 + $0x40] sm:$0xff]
    %v710 = vld [vmem:[#allocation7 + $0x48] sm:$0xff]
    %v711 = vld [vmem:[#allocation7 + $0x50] sm:$0xff]
    %v712 = vld [vmem:[#allocation7 + $0x58] sm:$0xff]
    %v713 = vld [vmem:[#allocation7 + $0x60] sm:$0xff]
    %v714 = vld [vmem:[#allocation7 + $0x68] sm:$0xff]
    %v715 = vld [vmem:[#allocation7 + $0x70] sm:$0xff]
    %v716 = vld [vmem:[#allocation7 + $0x78] sm:$0xff]
    %v717 = vld [vmem:[%s4] sm:$0x1]
    %v719 = vperm.slane %v717, 0
    %vm723 = vcmask 1041409
    %v724 = vsel %vm723, %v700, %v699
    %726 = vmatpush.msra.mxu0 %v716
    %727 = vmatpush.msra.mxu0 %v715
    %728 = vmatpush.msra.mxu0 %v714
    %729 = vmatpush.msra.mxu0 %v713
    %730 = vmatpush.msra.mxu0 %v712
    %731 = vmatpush.msra.mxu0 %v711
    %732 = vmatpush.msra.mxu0 %v710
    %733 = vmatpush.msra.mxu0 %v709
    %734 = vmatpush.msra.mxu0 %v708
    %735 = vmatpush.msra.mxu0 %v707
    %736 = vmatpush.msra.mxu0 %v706
    %737 = vmatpush.msra.mxu0 %v705
    %738 = vmatpush.msra.mxu0 %v704
    %739 = vmatpush.msra.mxu0 %v703
    %740 = vmatpush.msra.mxu0 %v702
    %741 = vmatpush.msra.mxu0 %v701
    %742 = vmatmul.f32.gmra.mxu0 %v724
    %v743 = vpop.f32.mrf.mxu0
    %v744 = vadd.f32 %v719, %v743
    %745 = vdwg.mxu0
    %746 = vst [vmem:[#allocation8] sm:$0x3] %v744
    // Predicated region
    $region34: #{tpu_custom_call.1} parent=1 // pred_check
      _
    $region35: #{tpu_custom_call.1} parent=1 // pred_check_branch
      %748 = sbr.rel (0) target = $region37
    $region36: #{tpu_custom_call.1} parent=1 // pred_region
      %750 = vsyncadd [#allocation4], 0
      %s752 = sshll.u32 [#allocation8], 4
      %s753 = int_to_ptr.vmem [resolvable:$true] %s752
      %s754 = sshll.u32 %s5, 4
      %s755 = int_to_ptr.hbm [resolvable:$true] %s754
      %757 = dma.vmem_to_hbm [thread:$0]  %s753, 32, %s755, [#allocation4]
    $region37: #{tpu_custom_call.1} parent=1 // pred_fallthru
      _
    // Predicated region
    $region38: #{tpu_custom_call.1} parent=1 // pred_check
      _
    $region39: #{tpu_custom_call.1} parent=1 // pred_check_branch
      %759 = sbr.rel (0) target = $region41
    $region40: #{tpu_custom_call.1} parent=1 // pred_region
      %761 = dma.done [#allocation4], 32
    $region41: #{tpu_custom_call.1} parent=1 // pred_fallthru
      _
    %762 = vsyncpa [#allocation3], 1
    %763 = vsyncpa [#allocation6], 1
    %764 = vsyncpa [#allocation4], 1

</llo_original>
